<compile_context>
chip_gen: v6e
topology: v6e:2x2x1
jax: 0.10.0
libtpu: 0.0.40
codegen_flags: <defaults>
</compile_context>

<pallas_src>
import jax
import jax.numpy as jnp
from jax.experimental import pallas as pl
from jax.experimental.pallas import tpu as pltpu


# ----------------------------------------------------------------------------
# Pallas kernel: 4-layer pointwise MLP on one row-tile (packed xy input).
# ----------------------------------------------------------------------------
def _encoder_mlp_kernel(xy_ref,
                        w0_ref, b0_ref,
                        w1_ref, b1_ref,
                        w2_ref, b2_ref,
                        w3_ref, b3_ref,
                        out_ref):
    xy = xy_ref[...]                                   # (tm, in_pad)  bf16

    # Layer 0 (concat already packed into xy; padded rows of W0 are zero).
    h = jnp.dot(xy, w0_ref[...], preferred_element_type=jnp.float32) + b0_ref[...]
    h = jnp.maximum(h, 0.0).astype(jnp.bfloat16)

    # Hidden layers 1..2 (lane-dense 128-wide weights).
    h = jnp.dot(h, w1_ref[...], preferred_element_type=jnp.float32) + b1_ref[...]
    h = jnp.maximum(h, 0.0).astype(jnp.bfloat16)

    h = jnp.dot(h, w2_ref[...], preferred_element_type=jnp.float32) + b2_ref[...]
    h = jnp.maximum(h, 0.0).astype(jnp.bfloat16)

    # Output layer: no activation, f32 store at true r_dim width.
    out = jnp.dot(h, w3_ref[...], preferred_element_type=jnp.float32) + b3_ref[...]
    out_ref[...] = out.astype(out_ref.dtype)


def _round_up(v, m):
    return ((v + m - 1) // m) * m


def _tile_budget():
    """Generation-dependent (tile_m cap, vmem_limit_bytes).

    v5e / v6e: 128 MiB VMEM per TensorCore -> ~16K-row tiles, 96 MiB limit.
    v7x (and unknown chips): 64 MiB -> conservative ~8K-row tiles, 48 MiB limit.
    Per-row VMEM footprint ~3-3.5 KB (double-buffered narrow in/out blocks at
    full 128-lane tiles + f32/bf16 intermediates), so both budgets have slack.
    """
    try:
        kind = jax.devices()[0].device_kind.lower()
    except Exception:
        kind = ""
    if ("v5" in kind) or ("v6" in kind):
        return 16384, 96 * 1024 * 1024
    return 8192, 48 * 1024 * 1024


def _choose_tile_m(M, cap):
    """Pick (tile_m, grid_m): fewest steps under the VMEM cap; if more than one
    step is needed, use an even step count with equal-size tiles so the two
    v7x TensorCores get balanced work (no effect on single-TC v5e/v6e)."""
    m8 = _round_up(M, 8)
    if m8 <= cap:
        return m8, 1
    k = 1
    while True:
        tile = _round_up(-(-M // (2 * k)), 8)
        if tile <= cap:
            break
        k += 1
    grid = -(-M // tile)
    return tile, grid


def _batch_mlp_pallas(xy, packed, r_dim):
    """xy: (M, in_pad) bf16 packed/zero-padded input; packed: padded params."""
    (w0, b0, w1, b1, w2, b2, w3, b3) = packed
    M, in_pad = xy.shape

    tile_m_cap, vmem_limit = _tile_budget()
    tile_m, grid_m = _choose_tile_m(M, tile_m_cap)

    full = lambda arr: pl.BlockSpec(arr.shape, lambda i: (0,) * arr.ndim)

    grid_spec = pltpu.PrefetchScalarGridSpec(
        num_scalar_prefetch=0,
        grid=(grid_m,),
        in_specs=[
            pl.BlockSpec((tile_m, in_pad), lambda i: (i, 0)),
            full(w0), full(b0),
            full(w1), full(b1),
            full(w2), full(b2),
            full(w3), full(b3),
        ],
        # True r_dim width: contiguous row-major HBM slab, no 16x write blowup.
        out_specs=pl.BlockSpec((tile_m, r_dim), lambda i: (i, 0)),
    )

    return pl.pallas_call(
        _encoder_mlp_kernel,
        out_shape=jax.ShapeDtypeStruct((M, r_dim), jnp.float32),
        grid_spec=grid_spec,
        compiler_params=pltpu.CompilerParams(
            dimension_semantics=("parallel",),
            vmem_limit_bytes=vmem_limit,
        ),
    )(xy, w0, b0, w1, b1, w2, b2, w3, b3)


# ----------------------------------------------------------------------------
# Parameter init (matches nn.Linear's U(-1/sqrt(fan_in), 1/sqrt(fan_in))).
# Weights stored as (in_features, out_features); biases as (1, out_features).
# ----------------------------------------------------------------------------
def init_params(key, x_dim, y_dim, r_dim, hid_dim=50, num_hid=3):
    assert num_hid == 3  # kernel structure is specialized to 3 hidden layers
    in_dim = x_dim + y_dim
    dims = [(in_dim, hid_dim), (hid_dim, hid_dim), (hid_dim, hid_dim), (hid_dim, r_dim)]
    params = []
    for (fin, fout) in dims:
        key, kw, kb = jax.random.split(key, 3)
        bound = 1.0 / jnp.sqrt(fin)
        w = jax.random.uniform(kw, (fin, fout), jnp.float32, -bound, bound)
        b = jax.random.uniform(kb, (1, fout), jnp.float32, -bound, bound)
        params.append((w, b))
    return params


def pack_params(params, x_dim, y_dim):
    """Zero-pad hidden dims to 128 lanes / input dim to 8, cast weights to bf16.

    Called ONCE when parameters are created/updated (hoisted out of the
    per-call jitted forward).  Zero padding is numerically inert:
    ReLU(0 + 0) = 0 and padded W rows/cols are zero.
    """
    (w0, b0), (w1, b1), (w2, b2), (w3, b3) = params
    in_dim = x_dim + y_dim
    assert w0.shape[0] == in_dim
    hid = w0.shape[1]
    hid_pad = _round_up(hid, 128)
    in_pad = _round_up(in_dim, 8)

    def padw(w, rows_to, cols_to):
        w = jnp.pad(w, ((0, rows_to - w.shape[0]), (0, cols_to - w.shape[1])))
        return w.astype(jnp.bfloat16)

    def padb(b, cols_to):
        return jnp.pad(b, ((0, 0), (0, cols_to - b.shape[1]))).astype(jnp.float32)

    w0p = padw(w0, in_pad, hid_pad)
    b0p = padb(b0, hid_pad)
    w1p = padw(w1, hid_pad, hid_pad)
    b1p = padb(b1, hid_pad)
    w2p = padw(w2, hid_pad, hid_pad)
    b2p = padb(b2, hid_pad)
    w3p = padw(w3, hid_pad, w3.shape[1])   # keep true r_dim output width
    b3p = b3.astype(jnp.float32)
    return (w0p, b0p, w1p, b1p, w2p, b2p, w3p, b3p)


# ----------------------------------------------------------------------------
# DeterministicEncoder forward.
# ----------------------------------------------------------------------------
@jax.jit
def deterministic_encoder_forward(x, y, packed):
    """x: (B, N, x_dim), y: (B, N, y_dim) -> (B, N, r_dim)."""
    B, N, x_dim = x.shape
    y_dim = y.shape[-1]
    in_pad = packed[0].shape[0]
    r_dim = packed[-2].shape[1]
    M = B * N

    # Pack x,y (+ zero lane-pad) into one bf16 slab in a single fused XLA pass;
    # the concat is required for the packed layer-0 matmul anyway, and doing
    # the bf16 cast in the same pass halves its HBM write and the kernel read.
    pad_cols = in_pad - (x_dim + y_dim)
    pieces = [x.reshape(M, x_dim), y.reshape(M, y_dim)]
    if pad_cols:
        pieces.append(jnp.zeros((M, pad_cols), x.dtype))
    xy = jnp.concatenate(pieces, axis=-1).astype(jnp.bfloat16)

    out2d = _batch_mlp_pallas(xy, packed, r_dim)
    return out2d.reshape(B, N, r_dim)


# ----------------------------------------------------------------------------
# Pure-JAX f32 reference.
# ----------------------------------------------------------------------------
def _reference_forward(x, y, params):
    xy = jnp.concatenate([x, y], axis=-1).astype(jnp.float32)
    h = xy
    for i, (w, b) in enumerate(params):
        h = h @ w + b
        if i < len(params) - 1:
            h = jnp.maximum(h, 0.0)
    return h


if __name__ == "__main__":
    # Small shapes consistent with forward(): (B, N, x_dim) and (B, N, y_dim).
    B, N = 2, 8
    x_dim, y_dim, r_dim, hid_dim, num_hid = 3, 2, 8, 32, 3

    key = jax.random.PRNGKey(0)
    kx, ky, kp = jax.random.split(key, 3)
    x = jax.random.normal(kx, (B, N, x_dim), jnp.float32)
    y = jax.random.normal(ky, (B, N, y_dim), jnp.float32)
    params = init_params(kp, x_dim, y_dim, r_dim, hid_dim, num_hid)
    packed = pack_params(params, x_dim, y_dim)   # once, outside the jitted forward

    r_i = jax.block_until_ready(deterministic_encoder_forward(x, y, packed))
    r_ref = _reference_forward(x, y, params)
    assert r_i.shape == (B, N, r_dim)
    # Tolerance loosened vs. pure f32 because activations/weights go through
    # the MXU in bf16 (f32 accumulation).
    assert jnp.allclose(r_i, r_ref, atol=5e-2, rtol=5e-2), "mismatch vs reference"

    # Second check: larger M with a ragged row count (M = 2100, not /8).
    B2, N2 = 3, 700
    x2 = jax.random.normal(jax.random.PRNGKey(1), (B2, N2, x_dim), jnp.float32)
    y2 = jax.random.normal(jax.random.PRNGKey(2), (B2, N2, y_dim), jnp.float32)
    r2 = jax.block_until_ready(deterministic_encoder_forward(x2, y2, packed))
    r2_ref = _reference_forward(x2, y2, params)
    assert r2.shape == (B2, N2, r_dim)
    assert jnp.allclose(r2, r2_ref, atol=5e-2, rtol=5e-2), "mismatch vs reference (large M)"

    print("KERNEL_OK")
</pallas_src>

<mosaic_0001>
module attributes {stable_mosaic.version = 11 : i64} {
  func.func @_encoder_mlp_kernel(%arg0: i32, %arg1: memref<16x8xbf16, #tpu.memory_space<vmem>>, %arg2: memref<8x128xbf16, #tpu.memory_space<vmem>>, %arg3: memref<1x128xf32, #tpu.memory_space<vmem>>, %arg4: memref<128x128xbf16, #tpu.memory_space<vmem>>, %arg5: memref<1x128xf32, #tpu.memory_space<vmem>>, %arg6: memref<128x128xbf16, #tpu.memory_space<vmem>>, %arg7: memref<1x128xf32, #tpu.memory_space<vmem>>, %arg8: memref<128x8xbf16, #tpu.memory_space<vmem>>, %arg9: memref<1x8xf32, #tpu.memory_space<vmem>>, %arg10: memref<16x8xf32, #tpu.memory_space<vmem>>) attributes {dimension_semantics = [#tpu.dimension_semantics<parallel>], iteration_bounds = array<i64: 1>, scalar_prefetch = 0 : i64, scratch_operands = 0 : i64, tpu.core_type = #tpu.core_type<tc>, window_params = [{transform_indices = @transform_0, window_bounds = array<i64: 16, 8>}, {pipeline_mode = #tpu.pipeline_mode<synchronous>, transform_indices = @transform_1, window_bounds = array<i64: 8, 128>}, {pipeline_mode = #tpu.pipeline_mode<synchronous>, transform_indices = @transform_2, window_bounds = array<i64: 1, 128>}, {pipeline_mode = #tpu.pipeline_mode<synchronous>, transform_indices = @transform_3, window_bounds = array<i64: 128, 128>}, {pipeline_mode = #tpu.pipeline_mode<synchronous>, transform_indices = @transform_4, window_bounds = array<i64: 1, 128>}, {pipeline_mode = #tpu.pipeline_mode<synchronous>, transform_indices = @transform_5, window_bounds = array<i64: 128, 128>}, {pipeline_mode = #tpu.pipeline_mode<synchronous>, transform_indices = @transform_6, window_bounds = array<i64: 1, 128>}, {pipeline_mode = #tpu.pipeline_mode<synchronous>, transform_indices = @transform_7, window_bounds = array<i64: 128, 8>}, {pipeline_mode = #tpu.pipeline_mode<synchronous>, transform_indices = @transform_8, window_bounds = array<i64: 1, 8>}, {transform_indices = @transform_9, window_bounds = array<i64: 16, 8>}]} {
    %c0 = arith.constant 0 : index
    %c0_0 = arith.constant 0 : index
    %0 = vector.load %arg1[%c0, %c0_0] : memref<16x8xbf16, #tpu.memory_space<vmem>>, vector<16x8xbf16>
    %c0_1 = arith.constant 0 : index
    %c0_2 = arith.constant 0 : index
    %1 = vector.load %arg2[%c0_1, %c0_2] : memref<8x128xbf16, #tpu.memory_space<vmem>>, vector<8x128xbf16>
    %cst = arith.constant dense<0.000000e+00> : vector<16x128xf32>
    %2 = tpu.matmul %0, %1, %cst {dimension_numbers = #tpu.dot_dimension_numbers<[1], [0], [0], [1], [0, 0, 1, 1], [], []>} : vector<16x8xbf16>, vector<8x128xbf16>, vector<16x128xf32> -> vector<16x128xf32>
    %c0_3 = arith.constant 0 : index
    %c0_4 = arith.constant 0 : index
    %3 = vector.load %arg3[%c0_3, %c0_4] : memref<1x128xf32, #tpu.memory_space<vmem>>, vector<1x128xf32>
    %4 = vector.broadcast %3 : vector<1x128xf32> to vector<16x128xf32>
    %5 = arith.addf %2, %4 : vector<16x128xf32>
    %cst_5 = arith.constant 0.000000e+00 : f32
    %6 = vector.broadcast %cst_5 : f32 to vector<16x128xf32>
    %7 = arith.maximumf %5, %6 : vector<16x128xf32>
    %8 = arith.truncf %7 : vector<16x128xf32> to vector<16x128xbf16>
    %c0_6 = arith.constant 0 : index
    %c0_7 = arith.constant 0 : index
    %9 = vector.load %arg4[%c0_6, %c0_7] : memref<128x128xbf16, #tpu.memory_space<vmem>>, vector<128x128xbf16>
    %cst_8 = arith.constant dense<0.000000e+00> : vector<16x128xf32>
    %10 = tpu.matmul %8, %9, %cst_8 {dimension_numbers = #tpu.dot_dimension_numbers<[1], [0], [0], [1], [0, 0, 1, 1], [], []>} : vector<16x128xbf16>, vector<128x128xbf16>, vector<16x128xf32> -> vector<16x128xf32>
    %c0_9 = arith.constant 0 : index
    %c0_10 = arith.constant 0 : index
    %11 = vector.load %arg5[%c0_9, %c0_10] : memref<1x128xf32, #tpu.memory_space<vmem>>, vector<1x128xf32>
    %12 = vector.broadcast %11 : vector<1x128xf32> to vector<16x128xf32>
    %13 = arith.addf %10, %12 : vector<16x128xf32>
    %cst_11 = arith.constant 0.000000e+00 : f32
    %14 = vector.broadcast %cst_11 : f32 to vector<16x128xf32>
    %15 = arith.maximumf %13, %14 : vector<16x128xf32>
    %16 = arith.truncf %15 : vector<16x128xf32> to vector<16x128xbf16>
    %c0_12 = arith.constant 0 : index
    %c0_13 = arith.constant 0 : index
    %17 = vector.load %arg6[%c0_12, %c0_13] : memref<128x128xbf16, #tpu.memory_space<vmem>>, vector<128x128xbf16>
    %cst_14 = arith.constant dense<0.000000e+00> : vector<16x128xf32>
    %18 = tpu.matmul %16, %17, %cst_14 {dimension_numbers = #tpu.dot_dimension_numbers<[1], [0], [0], [1], [0, 0, 1, 1], [], []>} : vector<16x128xbf16>, vector<128x128xbf16>, vector<16x128xf32> -> vector<16x128xf32>
    %c0_15 = arith.constant 0 : index
    %c0_16 = arith.constant 0 : index
    %19 = vector.load %arg7[%c0_15, %c0_16] : memref<1x128xf32, #tpu.memory_space<vmem>>, vector<1x128xf32>
    %20 = vector.broadcast %19 : vector<1x128xf32> to vector<16x128xf32>
    %21 = arith.addf %18, %20 : vector<16x128xf32>
    %cst_17 = arith.constant 0.000000e+00 : f32
    %22 = vector.broadcast %cst_17 : f32 to vector<16x128xf32>
    %23 = arith.maximumf %21, %22 : vector<16x128xf32>
    %24 = arith.truncf %23 : vector<16x128xf32> to vector<16x128xbf16>
    %c0_18 = arith.constant 0 : index
    %c0_19 = arith.constant 0 : index
    %25 = vector.load %arg8[%c0_18, %c0_19] : memref<128x8xbf16, #tpu.memory_space<vmem>>, vector<128x8xbf16>
    %cst_20 = arith.constant dense<0.000000e+00> : vector<16x8xf32>
    %26 = tpu.matmul %24, %25, %cst_20 {dimension_numbers = #tpu.dot_dimension_numbers<[1], [0], [0], [1], [0, 0, 1, 1], [], []>} : vector<16x128xbf16>, vector<128x8xbf16>, vector<16x8xf32> -> vector<16x8xf32>
    %c0_21 = arith.constant 0 : index
    %c0_22 = arith.constant 0 : index
    %27 = vector.load %arg9[%c0_21, %c0_22] : memref<1x8xf32, #tpu.memory_space<vmem>>, vector<1x8xf32>
    %28 = vector.broadcast %27 : vector<1x8xf32> to vector<16x8xf32>
    %29 = arith.addf %26, %28 : vector<16x8xf32>
    %c0_23 = arith.constant 0 : index
    %c0_24 = arith.constant 0 : index
    %30 = vector.load %arg10[%c0_23, %c0_24] : memref<16x8xf32, #tpu.memory_space<vmem>>, vector<16x8xf32>
    tpu.vector_store %arg10[%c0_23, %c0_24], %29 {strides = array<i32>} : memref<16x8xf32, #tpu.memory_space<vmem>>, vector<16x8xf32>,
    return
  }
  func.func @transform_0(%arg0: i32) -> (i32, i32) {
    %c0_i32 = arith.constant 0 : i32
    %c0_i32_0 = arith.constant 0 : i32
    return %arg0, %c0_i32 : i32, i32
  }
  func.func @transform_1(%arg0: i32) -> (i32, i32) {
    %c0_i32 = arith.constant 0 : i32
    %c0_i32_0 = arith.constant 0 : i32
    %c0_i32_1 = arith.constant 0 : i32
    return %c0_i32, %c0_i32_0 : i32, i32
  }
  func.func @transform_2(%arg0: i32) -> (i32, i32) {
    %c0_i32 = arith.constant 0 : i32
    %c0_i32_0 = arith.constant 0 : i32
    %c0_i32_1 = arith.constant 0 : i32
    return %c0_i32, %c0_i32_0 : i32, i32
  }
  func.func @transform_3(%arg0: i32) -> (i32, i32) {
    %c0_i32 = arith.constant 0 : i32
    %c0_i32_0 = arith.constant 0 : i32
    %c0_i32_1 = arith.constant 0 : i32
    return %c0_i32, %c0_i32_0 : i32, i32
  }
  func.func @transform_4(%arg0: i32) -> (i32, i32) {
    %c0_i32 = arith.constant 0 : i32
    %c0_i32_0 = arith.constant 0 : i32
    %c0_i32_1 = arith.constant 0 : i32
    return %c0_i32, %c0_i32_0 : i32, i32
  }
  func.func @transform_5(%arg0: i32) -> (i32, i32) {
    %c0_i32 = arith.constant 0 : i32
    %c0_i32_0 = arith.constant 0 : i32
    %c0_i32_1 = arith.constant 0 : i32
    return %c0_i32, %c0_i32_0 : i32, i32
  }
  func.func @transform_6(%arg0: i32) -> (i32, i32) {
    %c0_i32 = arith.constant 0 : i32
    %c0_i32_0 = arith.constant 0 : i32
    %c0_i32_1 = arith.constant 0 : i32
    return %c0_i32, %c0_i32_0 : i32, i32
  }
  func.func @transform_7(%arg0: i32) -> (i32, i32) {
    %c0_i32 = arith.constant 0 : i32
    %c0_i32_0 = arith.constant 0 : i32
    %c0_i32_1 = arith.constant 0 : i32
    return %c0_i32, %c0_i32_0 : i32, i32
  }
  func.func @transform_8(%arg0: i32) -> (i32, i32) {
    %c0_i32 = arith.constant 0 : i32
    %c0_i32_0 = arith.constant 0 : i32
    %c0_i32_1 = arith.constant 0 : i32
    return %c0_i32, %c0_i32_0 : i32, i32
  }
  func.func @transform_9(%arg0: i32) -> (i32, i32) {
    %c0_i32 = arith.constant 0 : i32
    %c0_i32_0 = arith.constant 0 : i32
    return %arg0, %c0_i32 : i32, i32
  }
}

</mosaic_0001>

<llo_original>
// kernel: deterministic_encoder_forward.1
$region0: #{deterministic_encoder_forward.1}
  #allocation0 [shape = 'u32[]', space=smem, size = 0x4, offset = 0x4, fixed_abs, tag = 'smem constant byte address 0x4 - core index']
  #allocation1 [shape = 'u32[144,128]{1,0:T(1,128)}', space=vmem, size = 0x12000, scoped, tag = 'internal scratch']
  %s0 = inlined_call_operand.vmem [shape: bf16[16,8], index: 0, kind: input, shape index: {}]
  %s1 = inlined_call_operand.hbm [shape: bf16[8,128], index: 1, kind: input, shape index: {}]
  %s2 = inlined_call_operand.vmem [shape: f32[1,128], index: 2, kind: input, shape index: {}]
  %s3 = inlined_call_operand.vmem [shape: bf16[128,128], index: 3, kind: input, shape index: {}]
  %s4 = inlined_call_operand.vmem [shape: f32[1,128], index: 4, kind: input, shape index: {}]
  %s5 = inlined_call_operand.vmem [shape: bf16[128,128], index: 5, kind: input, shape index: {}]
  %s6 = inlined_call_operand.vmem [shape: f32[1,128], index: 6, kind: input, shape index: {}]
  %s7 = inlined_call_operand.vmem [shape: bf16[128,8], index: 7, kind: input, shape index: {}]
  %s8 = inlined_call_operand.vmem [shape: f32[1,8], index: 8, kind: input, shape index: {}]
  %s9 = inlined_call_operand.hbm [shape: f32[16,8], index: 9, kind: output, shape index: {}]
  %s10 = sld [smem:[#allocation0]]
  $region50: #{deterministic_encoder_forward.1} parent=0
    _
  %s12 = ssub.s32 1, %s10
  %s13 = scalar_select 0, %s12, %s10
  $region1: #{deterministic_encoder_forward.1} parent=0
    #allocation2 [shape = 'u8[2048]{0}', space=vmem, size = 0x800, scoped, tag = 'input window, operand 1, single buffered']
    #allocation3 [shape = 's32[1]{0}', space=sflag, size = 0x4, scoped, tag = 'scoped memory for deterministic_encoder_forward.1']
    #allocation4 [shape = 's32[1]{0}', space=sflag, size = 0x4, scoped, tag = 'scoped memory for deterministic_encoder_forward.1']
    #allocation5 [shape = 'u8[8192]{0}', space=vmem, size = 0x2000, scoped, tag = 'output window, operand 0, single buffered']
    %14 = vsyncpa [#allocation3], 0
    %15 = vsyncpa [#allocation4], 0
    // Predicated region
    $region2: #{deterministic_encoder_forward.1} parent=1 // pred_check
      _
    $region3: #{deterministic_encoder_forward.1} parent=1 // pred_check_branch
      %17 = sbr.rel (0) target = $region5
    $region4: #{deterministic_encoder_forward.1} parent=1 // pred_region
      _
    $region5: #{deterministic_encoder_forward.1} parent=1 // pred_fallthru
      _
    // Predicated region
    $region6: #{deterministic_encoder_forward.1} parent=1 // pred_check
      _
    $region7: #{deterministic_encoder_forward.1} parent=1 // pred_check_branch
      %19 = sbr.rel (0) target = $region9
    $region8: #{deterministic_encoder_forward.1} parent=1 // pred_region
      %s21 = ssub.s32 64, 64
      %22 = vsyncadd [#allocation3], %s21
      %s24 = sshll.u32 [#allocation2], 4
      %s25 = int_to_ptr.vmem [resolvable:$true] %s24
      %27 = dma.hbm_to_vmem [thread:$0]  %s1, 64, %s25, [#allocation3]
    $region9: #{deterministic_encoder_forward.1} parent=1 // pred_fallthru
      _
    // Predicated region
    $region10: #{deterministic_encoder_forward.1} parent=1 // pred_check
      _
    $region11: #{deterministic_encoder_forward.1} parent=1 // pred_check_branch
      %29 = sbr.rel (0) target = $region13
    $region12: #{deterministic_encoder_forward.1} parent=1 // pred_region
      _
    $region13: #{deterministic_encoder_forward.1} parent=1 // pred_fallthru
      _
    // Predicated region
    $region14: #{deterministic_encoder_forward.1} parent=1 // pred_check
      _
    $region15: #{deterministic_encoder_forward.1} parent=1 // pred_check_branch
      %31 = sbr.rel (0) target = $region17
    $region16: #{deterministic_encoder_forward.1} parent=1 // pred_region
      _
    $region17: #{deterministic_encoder_forward.1} parent=1 // pred_fallthru
      _
    // Predicated region
    $region18: #{deterministic_encoder_forward.1} parent=1 // pred_check
      _
    $region19: #{deterministic_encoder_forward.1} parent=1 // pred_check_branch
      %33 = sbr.rel (0) target = $region21
    $region20: #{deterministic_encoder_forward.1} parent=1 // pred_region
      _
    $region21: #{deterministic_encoder_forward.1} parent=1 // pred_fallthru
      _
    // Predicated region
    $region22: #{deterministic_encoder_forward.1} parent=1 // pred_check
      _
    $region23: #{deterministic_encoder_forward.1} parent=1 // pred_check_branch
      %35 = sbr.rel (0) target = $region25
    $region24: #{deterministic_encoder_forward.1} parent=1 // pred_region
      _
    $region25: #{deterministic_encoder_forward.1} parent=1 // pred_fallthru
      _
    // Predicated region
    $region26: #{deterministic_encoder_forward.1} parent=1 // pred_check
      _
    $region27: #{deterministic_encoder_forward.1} parent=1 // pred_check_branch
      %37 = sbr.rel (0) target = $region29
    $region28: #{deterministic_encoder_forward.1} parent=1 // pred_region
      _
    $region29: #{deterministic_encoder_forward.1} parent=1 // pred_fallthru
      _
    // Predicated region
    $region30: #{deterministic_encoder_forward.1} parent=1 // pred_check
      _
    $region31: #{deterministic_encoder_forward.1} parent=1 // pred_check_branch
      %39 = sbr.rel (0) target = $region33
    $region32: #{deterministic_encoder_forward.1} parent=1 // pred_region
      _
    $region33: #{deterministic_encoder_forward.1} parent=1 // pred_fallthru
      _
    // Predicated region
    $region34: #{deterministic_encoder_forward.1} parent=1 // pred_check
      _
    $region35: #{deterministic_encoder_forward.1} parent=1 // pred_check_branch
      %41 = sbr.rel (0) target = $region37
    $region36: #{deterministic_encoder_forward.1} parent=1 // pred_region
      _
    $region37: #{deterministic_encoder_forward.1} parent=1 // pred_fallthru
      _
    // Predicated region
    $region38: #{deterministic_encoder_forward.1} parent=1 // pred_check
      _
    $region39: #{deterministic_encoder_forward.1} parent=1 // pred_check_branch
      %43 = sbr.rel (0) target = $region41
    $region40: #{deterministic_encoder_forward.1} parent=1 // pred_region
      %44 = dma.done [#allocation3], 64
    $region41: #{deterministic_encoder_forward.1} parent=1 // pred_fallthru
      _
    %v46 = vld [vmem:[%s0] sm:$0xf]
    %v47 = vld [vmem:[%s0 + $0x4] sm:$0xf]
    %v48 = vld [vmem:[#allocation2] sm:$0xf]
    %v49 = vld [vmem:[%s2] sm:$0x1]
    %v51 = vlaneseq
    %v52 = vshrl.u32 %v51, 7
    %v53 = vsub.s32 0, %v52
    %v54 = vrot.slane %v49, %v53
    %v58 = vunpack.c.l.b16 %v46
    %v59 = vunpack.c.l.b16 %v47
    %v60 = vpack.c.b16 %v59, %v58
    %vm61 = vcmask 64512
    %v63 = vsel %vm61, %v60, 0
    %vm65 = vcmask 1043456
    %v67 = vsel %vm65, %v48, 0
    %69 = vmatprep.subr.bf16.mxu0 0
    %70 = vmatpush1.bf16.msra.mxu0 0
    %71 = vmatprep.subr.bf16.mxu0 0
    %72 = vmatpush1.bf16.msra.mxu0 0
    %73 = vmatprep.subr.bf16.mxu0 0
    %74 = vmatpush1.bf16.msra.mxu0 0
    %75 = vmatprep.subr.bf16.mxu0 0
    %76 = vmatpush1.bf16.msra.mxu0 0
    %77 = vmatprep.subr.bf16.mxu0 0
    %78 = vmatpush1.bf16.msra.mxu0 0
    %79 = vmatprep.subr.bf16.mxu0 0
    %80 = vmatpush1.bf16.msra.mxu0 0
    %81 = vmatprep.subr.bf16.mxu0 0
    %82 = vmatpush1.bf16.msra.mxu0 0
    %83 = vmatprep.subr.bf16.mxu0 0
    %84 = vmatpush1.bf16.msra.mxu0 %v67
    %85 = vmatprep.subr.bf16.mxu0 0
    %86 = vmatpush2.bf16.msra.mxu0 0
    %87 = vmatprep.subr.bf16.mxu0 0
    %88 = vmatpush2.bf16.msra.mxu0 0
    %89 = vmatprep.subr.bf16.mxu0 0
    %90 = vmatpush2.bf16.msra.mxu0 0
    %91 = vmatprep.subr.bf16.mxu0 0
    %92 = vmatpush2.bf16.msra.mxu0 0
    %93 = vmatprep.subr.bf16.mxu0 0
    %94 = vmatpush2.bf16.msra.mxu0 0
    %95 = vmatprep.subr.bf16.mxu0 0
    %96 = vmatpush2.bf16.msra.mxu0 0
    %97 = vmatprep.subr.bf16.mxu0 0
    %98 = vmatpush2.bf16.msra.mxu0 0
    %99 = vmatprep.subr.bf16.mxu0 0
    %100 = vmatpush2.bf16.msra.mxu0 0
    %101 = vmatprep.mubr.bf16.mxu0 0
    %102 = vmatmul.mubr.bf16.gmra.mxu0 %v63
    %v103 = vpop.f32.mrf.mxu0
    %v104 = vadd.f32 %v54, %v103
    %v105 = vpop.f32.mrf.mxu0
    %v106 = vpop.f32.mrf.mxu0
    %v107 = vadd.f32 %v54, %v106
    %v108 = vpop.f32.mrf.mxu0
    %109 = vdwg.mxu0
    %v110 = vmax.f32 %v104, 0.0
    %v111 = vmax.f32 %v107, 0.0
    %v112 = vpack.c.bf16 %v111, %v110
    %v113 = vld [vmem:[%s3] sm:$0xf]
    %v114 = vld [vmem:[%s3 + $0x4] sm:$0xf]
    %v115 = vld [vmem:[%s3 + $0x8] sm:$0xf]
    %v116 = vld [vmem:[%s3 + $0xc] sm:$0xf]
    %v117 = vld [vmem:[%s3 + $0x10] sm:$0xf]
    %v118 = vld [vmem:[%s3 + $0x14] sm:$0xf]
    %v119 = vld [vmem:[%s3 + $0x18] sm:$0xf]
    %v120 = vld [vmem:[%s3 + $0x1c] sm:$0xf]
    %v121 = vld [vmem:[%s3 + $0x20] sm:$0xf]
    %v122 = vld [vmem:[%s3 + $0x24] sm:$0xf]
    %v123 = vld [vmem:[%s3 + $0x28] sm:$0xf]
    %v124 = vld [vmem:[%s3 + $0x2c] sm:$0xf]
    %v125 = vld [vmem:[%s3 + $0x30] sm:$0xf]
    %v126 = vld [vmem:[%s3 + $0x34] sm:$0xf]
    %v127 = vld [vmem:[%s3 + $0x38] sm:$0xf]
    %v128 = vld [vmem:[%s3 + $0x3c] sm:$0xf]
    %v129 = vld [vmem:[%s4] sm:$0x1]
    %v131 = vlaneseq
    %v132 = vshrl.u32 %v131, 7
    %v133 = vsub.s32 0, %v132
    %v134 = vrot.slane %v129, %v133
    %v152 = vunpack.c.l.b16 %v113
    %v153 = vunpack.c.l.b16 %v114
    %v154 = vunpack.c.l.b16 %v115
    %v155 = vunpack.c.l.b16 %v116
    %v156 = vunpack.c.l.b16 %v117
    %v157 = vunpack.c.l.b16 %v118
    %v158 = vunpack.c.l.b16 %v119
    %v159 = vunpack.c.l.b16 %v120
    %v160 = vunpack.c.l.b16 %v121
    %v161 = vunpack.c.l.b16 %v122
    %v162 = vunpack.c.l.b16 %v123
    %v163 = vunpack.c.l.b16 %v124
    %v164 = vunpack.c.l.b16 %v125
    %v165 = vunpack.c.l.b16 %v126
    %v166 = vunpack.c.l.b16 %v127
    %v167 = vunpack.c.l.b16 %v128
    %v168 = vpack.c.b16 %v153, %v152
    %v169 = vpack.c.b16 %v155, %v154
    %v170 = vpack.c.b16 %v157, %v156
    %v171 = vpack.c.b16 %v159, %v158
    %v172 = vpack.c.b16 %v161, %v160
    %v173 = vpack.c.b16 %v163, %v162
    %v174 = vpack.c.b16 %v165, %v164
    %v175 = vpack.c.b16 %v167, %v166
    %184 = vmatprep.subr.bf16.mxu0 0
    %185 = vmatpush1.bf16.msra.mxu0 %v175
    %186 = vmatprep.subr.bf16.mxu0 0
    %187 = vmatpush1.bf16.msra.mxu0 %v174
    %188 = vmatprep.subr.bf16.mxu0 0
    %189 = vmatpush1.bf16.msra.mxu0 %v173
    %190 = vmatprep.subr.bf16.mxu0 0
    %191 = vmatpush1.bf16.msra.mxu0 %v172
    %192 = vmatprep.subr.bf16.mxu0 0
    %193 = vmatpush1.bf16.msra.mxu0 %v171
    %194 = vmatprep.subr.bf16.mxu0 0
    %195 = vmatpush1.bf16.msra.mxu0 %v170
    %196 = vmatprep.subr.bf16.mxu0 0
    %197 = vmatpush1.bf16.msra.mxu0 %v169
    %198 = vmatprep.subr.bf16.mxu0 0
    %199 = vmatpush1.bf16.msra.mxu0 %v168
    %200 = vmatprep.subr.bf16.mxu0 0
    %201 = vmatpush2.bf16.msra.mxu0 0
    %202 = vmatprep.subr.bf16.mxu0 0
    %203 = vmatpush2.bf16.msra.mxu0 0
    %204 = vmatprep.subr.bf16.mxu0 0
    %205 = vmatpush2.bf16.msra.mxu0 0
    %206 = vmatprep.subr.bf16.mxu0 0
    %207 = vmatpush2.bf16.msra.mxu0 0
    %208 = vmatprep.subr.bf16.mxu0 0
    %209 = vmatpush2.bf16.msra.mxu0 0
    %210 = vmatprep.subr.bf16.mxu0 0
    %211 = vmatpush2.bf16.msra.mxu0 0
    %212 = vmatprep.subr.bf16.mxu0 0
    %213 = vmatpush2.bf16.msra.mxu0 0
    %214 = vmatprep.subr.bf16.mxu0 0
    %215 = vmatpush2.bf16.msra.mxu0 0
    %216 = vmatprep.mubr.bf16.mxu0 0
    %217 = vmatmul.mubr.bf16.gmra.mxu0 %v112
    %v218 = vpop.f32.mrf.mxu0
    %v219 = vadd.f32 %v134, %v218
    %v220 = vpop.f32.mrf.mxu0
    %v221 = vpop.f32.mrf.mxu0
    %v222 = vadd.f32 %v134, %v221
    %v223 = vpop.f32.mrf.mxu0
    %224 = vdwg.mxu0
    %v225 = vmax.f32 %v219, 0.0
    %v226 = vmax.f32 %v222, 0.0
    %v227 = vpack.c.bf16 %v226, %v225
    %v228 = vld [vmem:[%s5] sm:$0xf]
    %v229 = vld [vmem:[%s5 + $0x4] sm:$0xf]
    %v230 = vld [vmem:[%s5 + $0x8] sm:$0xf]
    %v231 = vld [vmem:[%s5 + $0xc] sm:$0xf]
    %v232 = vld [vmem:[%s5 + $0x10] sm:$0xf]
    %v233 = vld [vmem:[%s5 + $0x14] sm:$0xf]
    %v234 = vld [vmem:[%s5 + $0x18] sm:$0xf]
    %v235 = vld [vmem:[%s5 + $0x1c] sm:$0xf]
    %v236 = vld [vmem:[%s5 + $0x20] sm:$0xf]
    %v237 = vld [vmem:[%s5 + $0x24] sm:$0xf]
    %v238 = vld [vmem:[%s5 + $0x28] sm:$0xf]
    %v239 = vld [vmem:[%s5 + $0x2c] sm:$0xf]
    %v240 = vld [vmem:[%s5 + $0x30] sm:$0xf]
    %v241 = vld [vmem:[%s5 + $0x34] sm:$0xf]
    %v242 = vld [vmem:[%s5 + $0x38] sm:$0xf]
    %v243 = vld [vmem:[%s5 + $0x3c] sm:$0xf]
    %v244 = vld [vmem:[%s6] sm:$0x1]
    %v246 = vlaneseq
    %v247 = vshrl.u32 %v246, 7
    %v248 = vsub.s32 0, %v247
    %v249 = vrot.slane %v244, %v248
    %v267 = vunpack.c.l.b16 %v228
    %v268 = vunpack.c.l.b16 %v229
    %v269 = vunpack.c.l.b16 %v230
    %v270 = vunpack.c.l.b16 %v231
    %v271 = vunpack.c.l.b16 %v232
    %v272 = vunpack.c.l.b16 %v233
    %v273 = vunpack.c.l.b16 %v234
    %v274 = vunpack.c.l.b16 %v235
    %v275 = vunpack.c.l.b16 %v236
    %v276 = vunpack.c.l.b16 %v237
    %v277 = vunpack.c.l.b16 %v238
    %v278 = vunpack.c.l.b16 %v239
    %v279 = vunpack.c.l.b16 %v240
    %v280 = vunpack.c.l.b16 %v241
    %v281 = vunpack.c.l.b16 %v242
    %v282 = vunpack.c.l.b16 %v243
    %v283 = vpack.c.b16 %v268, %v267
    %v284 = vpack.c.b16 %v270, %v269
    %v285 = vpack.c.b16 %v272, %v271
    %v286 = vpack.c.b16 %v274, %v273
    %v287 = vpack.c.b16 %v276, %v275
    %v288 = vpack.c.b16 %v278, %v277
    %v289 = vpack.c.b16 %v280, %v279
    %v290 = vpack.c.b16 %v282, %v281
    %299 = vmatprep.subr.bf16.mxu0 0
    %300 = vmatpush1.bf16.msra.mxu0 %v290
    %301 = vmatprep.subr.bf16.mxu0 0
    %302 = vmatpush1.bf16.msra.mxu0 %v289
    %303 = vmatprep.subr.bf16.mxu0 0
    %304 = vmatpush1.bf16.msra.mxu0 %v288
    %305 = vmatprep.subr.bf16.mxu0 0
    %306 = vmatpush1.bf16.msra.mxu0 %v287
    %307 = vmatprep.subr.bf16.mxu0 0
    %308 = vmatpush1.bf16.msra.mxu0 %v286
    %309 = vmatprep.subr.bf16.mxu0 0
    %310 = vmatpush1.bf16.msra.mxu0 %v285
    %311 = vmatprep.subr.bf16.mxu0 0
    %312 = vmatpush1.bf16.msra.mxu0 %v284
    %313 = vmatprep.subr.bf16.mxu0 0
    %314 = vmatpush1.bf16.msra.mxu0 %v283
    %315 = vmatprep.subr.bf16.mxu0 0
    %316 = vmatpush2.bf16.msra.mxu0 0
    %317 = vmatprep.subr.bf16.mxu0 0
    %318 = vmatpush2.bf16.msra.mxu0 0
    %319 = vmatprep.subr.bf16.mxu0 0
    %320 = vmatpush2.bf16.msra.mxu0 0
    %321 = vmatprep.subr.bf16.mxu0 0
    %322 = vmatpush2.bf16.msra.mxu0 0
    %323 = vmatprep.subr.bf16.mxu0 0
    %324 = vmatpush2.bf16.msra.mxu0 0
    %325 = vmatprep.subr.bf16.mxu0 0
    %326 = vmatpush2.bf16.msra.mxu0 0
    %327 = vmatprep.subr.bf16.mxu0 0
    %328 = vmatpush2.bf16.msra.mxu0 0
    %329 = vmatprep.subr.bf16.mxu0 0
    %330 = vmatpush2.bf16.msra.mxu0 0
    %331 = vmatprep.mubr.bf16.mxu0 0
    %332 = vmatmul.mubr.bf16.gmra.mxu0 %v227
    %v333 = vpop.f32.mrf.mxu0
    %v334 = vadd.f32 %v249, %v333
    %v335 = vpop.f32.mrf.mxu0
    %v336 = vpop.f32.mrf.mxu0
    %v337 = vadd.f32 %v249, %v336
    %v338 = vpop.f32.mrf.mxu0
    %339 = vdwg.mxu0
    %v340 = vmax.f32 %v334, 0.0
    %v341 = vmax.f32 %v337, 0.0
    %v342 = vpack.c.bf16 %v341, %v340
    %v343 = vld [vmem:[%s7] sm:$0xf]
    %v344 = vld [vmem:[%s7 + $0x4] sm:$0xf]
    %v345 = vld [vmem:[%s7 + $0x8] sm:$0xf]
    %v346 = vld [vmem:[%s7 + $0xc] sm:$0xf]
    %v347 = vld [vmem:[%s7 + $0x10] sm:$0xf]
    %v348 = vld [vmem:[%s7 + $0x14] sm:$0xf]
    %v349 = vld [vmem:[%s7 + $0x18] sm:$0xf]
    %v350 = vld [vmem:[%s7 + $0x1c] sm:$0xf]
    %v351 = vld [vmem:[%s7 + $0x20] sm:$0xf]
    %v352 = vld [vmem:[%s7 + $0x24] sm:$0xf]
    %v353 = vld [vmem:[%s7 + $0x28] sm:$0xf]
    %v354 = vld [vmem:[%s7 + $0x2c] sm:$0xf]
    %v355 = vld [vmem:[%s7 + $0x30] sm:$0xf]
    %v356 = vld [vmem:[%s7 + $0x34] sm:$0xf]
    %v357 = vld [vmem:[%s7 + $0x38] sm:$0xf]
    %v358 = vld [vmem:[%s7 + $0x3c] sm:$0xf]
    %v359 = vld [vmem:[%s8] sm:$0x1]
    %v361 = vlaneseq
    %v362 = vshrl.u32 %v361, 7
    %v363 = vsub.s32 0, %v362
    %v364 = vrot.slane %v359, %v363
    %v382 = vunpack.c.l.b16 %v343
    %v383 = vunpack.c.l.b16 %v344
    %v384 = vunpack.c.l.b16 %v345
    %v385 = vunpack.c.l.b16 %v346
    %v386 = vunpack.c.l.b16 %v347
    %v387 = vunpack.c.l.b16 %v348
    %v388 = vunpack.c.l.b16 %v349
    %v389 = vunpack.c.l.b16 %v350
    %v390 = vunpack.c.l.b16 %v351
    %v391 = vunpack.c.l.b16 %v352
    %v392 = vunpack.c.l.b16 %v353
    %v393 = vunpack.c.l.b16 %v354
    %v394 = vunpack.c.l.b16 %v355
    %v395 = vunpack.c.l.b16 %v356
    %v396 = vunpack.c.l.b16 %v357
    %v397 = vunpack.c.l.b16 %v358
    %v398 = vpack.c.b16 %v383, %v382
    %v399 = vpack.c.b16 %v385, %v384
    %v400 = vpack.c.b16 %v387, %v386
    %v401 = vpack.c.b16 %v389, %v388
    %v402 = vpack.c.b16 %v391, %v390
    %v403 = vpack.c.b16 %v393, %v392
    %v404 = vpack.c.b16 %v395, %v394
    %v405 = vpack.c.b16 %v397, %v396
    %414 = vmatprep.subr.bf16.mxu0 0
    %415 = vmatpush1.bf16.msra.mxu0 %v405
    %416 = vmatprep.subr.bf16.mxu0 0
    %417 = vmatpush1.bf16.msra.mxu0 %v404
    %418 = vmatprep.subr.bf16.mxu0 0
    %419 = vmatpush1.bf16.msra.mxu0 %v403
    %420 = vmatprep.subr.bf16.mxu0 0
    %421 = vmatpush1.bf16.msra.mxu0 %v402
    %422 = vmatprep.subr.bf16.mxu0 0
    %423 = vmatpush1.bf16.msra.mxu0 %v401
    %424 = vmatprep.subr.bf16.mxu0 0
    %425 = vmatpush1.bf16.msra.mxu0 %v400
    %426 = vmatprep.subr.bf16.mxu0 0
    %427 = vmatpush1.bf16.msra.mxu0 %v399
    %428 = vmatprep.subr.bf16.mxu0 0
    %429 = vmatpush1.bf16.msra.mxu0 %v398
    %430 = vmatprep.subr.bf16.mxu0 0
    %431 = vmatpush2.bf16.msra.mxu0 0
    %432 = vmatprep.subr.bf16.mxu0 0
    %433 = vmatpush2.bf16.msra.mxu0 0
    %434 = vmatprep.subr.bf16.mxu0 0
    %435 = vmatpush2.bf16.msra.mxu0 0
    %436 = vmatprep.subr.bf16.mxu0 0
    %437 = vmatpush2.bf16.msra.mxu0 0
    %438 = vmatprep.subr.bf16.mxu0 0
    %439 = vmatpush2.bf16.msra.mxu0 0
    %440 = vmatprep.subr.bf16.mxu0 0
    %441 = vmatpush2.bf16.msra.mxu0 0
    %442 = vmatprep.subr.bf16.mxu0 0
    %443 = vmatpush2.bf16.msra.mxu0 0
    %444 = vmatprep.subr.bf16.mxu0 0
    %445 = vmatpush2.bf16.msra.mxu0 0
    %446 = vmatprep.mubr.bf16.mxu0 0
    %447 = vmatmul.mubr.bf16.gmra.mxu0 %v342
    %v448 = vpop.f32.mrf.mxu0
    %v449 = vadd.f32 %v364, %v448
    %v450 = vpop.f32.mrf.mxu0
    %v451 = vpop.f32.mrf.mxu0
    %v452 = vadd.f32 %v364, %v451
    %v453 = vpop.f32.mrf.mxu0
    %454 = vdwg.mxu0
    %455 = vst.msk [vmem:[#allocation5] sm:$0xff] %vm61, %v449
    %456 = vst.msk [vmem:[#allocation5 + $0x8] sm:$0xff] %vm61, %v452
    // Predicated region
    $region42: #{deterministic_encoder_forward.1} parent=1 // pred_check
      _
    $region43: #{deterministic_encoder_forward.1} parent=1 // pred_check_branch
      %458 = sbr.rel (0) target = $region45
    $region44: #{deterministic_encoder_forward.1} parent=1 // pred_region
      %s460 = ssub.s32 256, 256
      %461 = vsyncadd [#allocation4], %s460
      %s462 = sshll.u32 [#allocation5], 4
      %s463 = int_to_ptr.vmem [resolvable:$true] %s462
      %468 = dma.vmem_to_hbm [thread:$0]  %s463, 256, %s9, [#allocation4], 128, 128, 8
    $region45: #{deterministic_encoder_forward.1} parent=1 // pred_fallthru
      _
    // Predicated region
    $region46: #{deterministic_encoder_forward.1} parent=1 // pred_check
      _
    $region47: #{deterministic_encoder_forward.1} parent=1 // pred_check_branch
      %470 = sbr.rel (0) target = $region49
    $region48: #{deterministic_encoder_forward.1} parent=1 // pred_region
      %471 = dma.done [#allocation4], 256
    $region49: #{deterministic_encoder_forward.1} parent=1 // pred_fallthru
      _
    %472 = vsyncpa [#allocation3], 1
    %473 = vsyncpa [#allocation4], 1

</llo_original>
